<compile_context>
chip_gen: v7x
topology: tpu7x:2x2x1
jax: 0.10.0
libtpu: 0.0.40
codegen_flags: <defaults>
</compile_context>

<pallas_src>
import functools

import jax
import jax.numpy as jnp
from jax.experimental import pallas as pl
from jax.experimental.pallas import tpu as pltpu


def _round_up(x, m):
    return (x + m - 1) // m * m


def _pad2(a, rows, cols):
    return jnp.pad(a, ((0, rows - a.shape[0]), (0, cols - a.shape[1])))


def _vmem_limit(bytes_estimate):
    # Explicit scoped-VMEM limit (review: v7x scoped default is 32 MiB of a
    # 64 MiB core; v5e default is 16 MiB).  2x headroom over the estimate,
    # clamped to a range that is safe on every generation.
    return int(min(48 * 2**20, max(16 * 2**20, 2 * bytes_estimate)))


# ----------------------- fused small-graph kernel ----------------------------
def _gcn2_fused_kernel(a_ref, x_ref, w1_ref, b1_ref, w2_ref, b2_ref, o_ref):
    """Both GCNConv layers in one kernel.

    The whole (padded) problem is resident in VMEM: H never round-trips to HBM
    and A_hat is read exactly once.  All matmuls accumulate in f32.
    """
    a = a_ref[...]
    ax = jnp.dot(a, x_ref[...], preferred_element_type=jnp.float32)
    h = jnp.dot(ax, w1_ref[...], preferred_element_type=jnp.float32) + b1_ref[...]
    h = jnp.maximum(h, 0.0)
    # NOTE: padded node rows of `h` carry relu(bias) garbage; harmless because
    # the matching A_hat columns below are zero and the caller slices the
    # output back to the true node count.  Padded feature columns are exactly
    # zero (zero-padded W1 / b1).
    ah = jnp.dot(a, h, preferred_element_type=jnp.float32)
    o_ref[...] = (jnp.dot(ah, w2_ref[...], preferred_element_type=jnp.float32)
                  + b2_ref[...]).astype(o_ref.dtype)


def _gcn2_fused(a, x, w1, b1, w2, b2, *, out_dtype, vmem_bytes):
    n = a.shape[0]
    f = x.shape[1]
    hd = w1.shape[1]
    o = w2.shape[1]
    cost = pl.CostEstimate(
        flops=2 * n * n * f + 2 * n * f * hd + 2 * n * n * hd + 2 * n * hd * o,
        transcendentals=0,
        bytes_accessed=vmem_bytes,
    )
    # No grid: every operand is a single whole-array block in VMEM.
    return pl.pallas_call(
        _gcn2_fused_kernel,
        out_shape=jax.ShapeDtypeStruct((n, o), out_dtype),
        compiler_params=pltpu.CompilerParams(
            vmem_limit_bytes=_vmem_limit(vmem_bytes)),
        cost_estimate=cost,
    )(a, x, w1, b1, w2, b2)


# ----------------------- tiled large-graph kernel ----------------------------
def _gcn_layer_kernel(a_ref, x_ref, w_ref, b_ref, o_ref, ax_ref, *, apply_relu):
    """One GCNConv layer on a row-block of nodes.

    grid = (row_blocks, col_blocks); axis 1 reduces over column blocks of
    A_hat.  Computes o = (A_hat @ X) @ W + b (optionally ReLU): re-associated
    so the O(N^2) contraction runs over the narrow feature width, accumulated
    in an f32 VMEM scratch.
    """
    k = pl.program_id(1)

    @pl.when(k == 0)
    def _():
        ax_ref[...] = jnp.zeros_like(ax_ref)

    # bf16 x bf16 -> f32 accumulate on the MXU.
    ax_ref[...] += jnp.dot(a_ref[...], x_ref[...],
                           preferred_element_type=jnp.float32)

    @pl.when(k == pl.num_programs(1) - 1)
    def _():
        # W / b stay f32 so the f32 A@X accumulator feeds the second matmul
        # directly (no lossy f32->bf16 round trip).  Bias / ReLU stay f32 on
        # the VPU (v5e has no bf16 VPU path).
        h = jnp.dot(ax_ref[...], w_ref[...],
                    preferred_element_type=jnp.float32) + b_ref[...]
        if apply_relu:
            h = jnp.maximum(h, 0.0)
        o_ref[...] = h.astype(o_ref.dtype)


def _gcn_layer_tiled(a, x, w, b, *, apply_relu, out_dtype, tm, tn):
    n = a.shape[0]
    f = x.shape[1]
    h = w.shape[1]
    grid = (n // tm, n // tn)

    def _bytes(arr):
        return arr.size * arr.dtype.itemsize

    # Double-buffered working-set estimate -> explicit scoped-VMEM limit.
    vmem_est = (2 * tm * tn * a.dtype.itemsize
                + 2 * tn * f * x.dtype.itemsize
                + 2 * (f * h + h) * 4
                + 2 * tm * h * jnp.dtype(out_dtype).itemsize
                + tm * f * 4)
    cost = pl.CostEstimate(
        flops=2 * n * n * f + 2 * n * f * h,
        transcendentals=0,
        bytes_accessed=_bytes(a) + _bytes(x) + _bytes(w) + _bytes(b)
        + n * h * jnp.dtype(out_dtype).itemsize,
    )

    return pl.pallas_call(
        functools.partial(_gcn_layer_kernel, apply_relu=apply_relu),
        out_shape=jax.ShapeDtypeStruct((n, h), out_dtype),
        grid_spec=pltpu.PrefetchScalarGridSpec(
            num_scalar_prefetch=0,
            grid=grid,
            in_specs=[
                # A_hat tile: read-once streaming.  If DMA shows up exposed at
                # very large N, sweep pipeline_mode=pl.Buffered(3) here.
                pl.BlockSpec((tm, tn), lambda i, k: (i, k)),
                pl.BlockSpec((tn, f), lambda i, k: (k, 0)),   # X rows for col tile
                # Pinned W / b (constant index).  For very wide hidden layers on
                # v7x, single-buffer them (pipeline_mode=pl.Buffered(1)) to save
                # VMEM; negligible at these sizes, so left at the default.
                pl.BlockSpec((f, h), lambda i, k: (0, 0)),
                pl.BlockSpec((1, h), lambda i, k: (0, 0)),
            ],
            out_specs=pl.BlockSpec((tm, h), lambda i, k: (i, 0)),
            scratch_shapes=[pltpu.VMEM((tm, f), jnp.float32)],  # A@X accumulator
        ),
        compiler_params=pltpu.CompilerParams(
            dimension_semantics=("parallel", "arbitrary"),
            vmem_limit_bytes=_vmem_limit(vmem_est)),
        cost_estimate=cost,
    )(a, x, w, b)


def _pick_tiles(n, target=256):
    """Tile sizes for the tiled path.

    tn is the MXU contraction dim of the A@X matmul (raise toward 256-512 on
    v6e/v7x); tm is capped so the 'parallel' row axis keeps >= 2 blocks for
    v7x's two TensorCores whenever the graph is big enough.
    """
    n_pad = _round_up(n, 128)
    tn = 128
    while tn * 2 <= min(target, n_pad) and n_pad % (tn * 2) == 0:
        tn *= 2
    tm = 128
    while tm * 2 <= min(target, n_pad // 2) and n_pad % (tm * 2) == 0:
        tm *= 2
    return n_pad, tm, tn


# ------------------------------ forward pass ---------------------------------
def gnn_forward_pallas(a_hat, x, w1, b1, w2, b2, *,
                       tile_target=256, fuse_vmem_budget=12 * 2**20,
                       force_tiled=False, operand_dtype=jnp.bfloat16):
    """out = A_hat @ relu(A_hat @ X @ W1 + b1) @ W2 + b2   (GCNConv x 2)."""
    n, f_in = x.shape
    hid = w1.shape[1]
    f_out = w2.shape[1]

    # Lane-dense (x128) feature dims; weights / biases stay f32 in both paths.
    f_p = _round_up(f_in, 128)
    h_p = _round_up(hid, 128)
    o_p = _round_up(f_out, 128)
    w1_p = _pad2(w1.astype(jnp.float32), f_p, h_p)
    b1_p = _pad2(b1.astype(jnp.float32).reshape(1, -1), 1, h_p)
    w2_p = _pad2(w2.astype(jnp.float32), h_p, o_p)
    b2_p = _pad2(b2.astype(jnp.float32).reshape(1, -1), 1, o_p)

    # ---- small-graph path: single fused kernel, no 128-row node padding -----
    n_s = _round_up(n, 8)   # f32 sublane multiple only
    fused_bytes = 4 * (n_s * n_s + n_s * f_p + f_p * h_p + h_p
                       + h_p * o_p + o_p + n_s * o_p)
    if not force_tiled and fused_bytes <= fuse_vmem_budget:
        a_p = _pad2(a_hat.astype(jnp.float32), n_s, n_s)   # keep A_hat in f32
        x_p = _pad2(x.astype(jnp.float32), n_s, f_p)
        out = _gcn2_fused(a_p, x_p, w1_p, b1_p, w2_p, b2_p,
                          out_dtype=jnp.float32, vmem_bytes=fused_bytes)
        return out[:n, :f_out]

    # ---- large-graph path: tiled + pipelined per-layer kernels --------------
    # TODO(synk): for real sparse graphs, replace the densified A_hat with a
    # CSR / block-sparse gather SpMM via PrefetchScalarGridSpec scalar prefetch.
    n_pad, tm, tn = _pick_tiles(n, target=tile_target)
    a_p = _pad2(a_hat, n_pad, n_pad).astype(operand_dtype)
    x_p = _pad2(x, n_pad, f_p).astype(operand_dtype)
    h1 = _gcn_layer_tiled(a_p, x_p, w1_p, b1_p, apply_relu=True,
                          out_dtype=operand_dtype, tm=tm, tn=tn)
    out = _gcn_layer_tiled(a_p, h1, w2_p, b2_p, apply_relu=False,
                           out_dtype=jnp.float32, tm=tm, tn=tn)
    return out[:n, :f_out]


# ------------------------------- glue (JAX) -----------------------------------
def build_normalized_adjacency(edge_index, num_nodes):
    """PyG GCNConv gcn_norm: add self loops, symmetric D^-1/2 (A+I) D^-1/2."""
    src, dst = edge_index[0], edge_index[1]
    a = jnp.zeros((num_nodes, num_nodes), jnp.float32)
    a = a.at[dst, src].set(1.0)                      # message flows src -> dst
    a = a + jnp.eye(num_nodes, dtype=jnp.float32)    # self loops
    deg = a.sum(axis=1)
    dinv = jax.lax.rsqrt(deg)
    return dinv[:, None] * a * dinv[None, :]


def make_ring_chord_edges(n):
    """Deterministic duplicate-free edge list: bidirectional ring + chords."""
    idx = jnp.arange(n, dtype=jnp.int32)
    src = jnp.concatenate([idx, (idx + 1) % n, idx, (idx + 5) % n])
    dst = jnp.concatenate([(idx + 1) % n, idx, (idx + 5) % n, idx])
    return jnp.stack([src, dst], axis=0)             # (2, 4*n)


def gnn_reference_f32(a_hat, x, w1, b1, w2, b2):
    """Float32 reference, HIGHEST-precision matmuls, same (A@X)@W association."""
    hp = jax.lax.Precision.HIGHEST
    h = jnp.dot(jnp.dot(a_hat, x, precision=hp), w1, precision=hp) + b1
    h = jnp.maximum(h, 0.0)
    return jnp.dot(jnp.dot(a_hat, h, precision=hp), w2, precision=hp) + b2


def _make_problem(key, n, in_c, hid_c, out_c):
    kx, kw1, kb1, kw2, kb2 = jax.random.split(key, 5)
    x = jax.random.normal(kx, (n, in_c), dtype=jnp.float32)
    edge_index = make_ring_chord_edges(n)
    w1 = jax.random.normal(kw1, (in_c, hid_c), jnp.float32) / jnp.sqrt(in_c)
    b1 = jax.random.normal(kb1, (1, hid_c), jnp.float32) * 0.01
    w2 = jax.random.normal(kw2, (hid_c, out_c), jnp.float32) / jnp.sqrt(hid_c)
    b2 = jax.random.normal(kb2, (1, out_c), jnp.float32) * 0.01
    a_hat = build_normalized_adjacency(edge_index, n)
    return a_hat, x, w1, b1, w2, b2


# ----------------------------------- main --------------------------------------
if __name__ == "__main__":
    key = jax.random.PRNGKey(0)
    k_small, k_large = jax.random.split(key, 2)

    # ---- shipped configuration: tiny graph -> fused single-kernel path -------
    N, IN_C, HID_C, OUT_C = 32, 16, 32, 8
    a_hat, x, w1, b1, w2, b2 = _make_problem(k_small, N, IN_C, HID_C, OUT_C)

    out = gnn_forward_pallas(a_hat, x, w1, b1, w2, b2)
    out = jax.block_until_ready(out)
    assert out.shape == (N, OUT_C)
    ref = gnn_reference_f32(a_hat, x, w1, b1, w2, b2)
    assert jnp.allclose(out, ref, atol=5e-3, rtol=5e-3), "fused path mismatch"

    # ---- larger graph -> tiled / pipelined per-layer path (bf16 streaming) ---
    N2 = 512
    a2, x2, w12, b12, w22, b22 = _make_problem(k_large, N2, IN_C, HID_C, OUT_C)
    out2 = gnn_forward_pallas(a2, x2, w12, b12, w22, b22, force_tiled=True)
    out2 = jax.block_until_ready(out2)
    assert out2.shape == (N2, OUT_C)
    ref2 = gnn_reference_f32(a2, x2, w12, b12, w22, b22)
    assert jnp.allclose(out2, ref2, atol=5e-2, rtol=5e-2), "tiled path mismatch"

    print("KERNEL_OK")
</pallas_src>

<mosaic_0001>
module attributes {stable_mosaic.version = 11 : i64} {
  func.func @_gcn2_fused_kernel(%arg0: memref<32x32xf32, #tpu.memory_space<vmem>>, %arg1: memref<32x128xf32, #tpu.memory_space<vmem>>, %arg2: memref<128x128xf32, #tpu.memory_space<vmem>>, %arg3: memref<1x128xf32, #tpu.memory_space<vmem>>, %arg4: memref<128x128xf32, #tpu.memory_space<vmem>>, %arg5: memref<1x128xf32, #tpu.memory_space<vmem>>, %arg6: memref<32x128xf32, #tpu.memory_space<vmem>>) attributes {dimension_semantics = [], scalar_prefetch = 0 : i64, scratch_operands = 0 : i64, tpu.core_type = #tpu.core_type<tc>} {
    %c0 = arith.constant 0 : index
    %c0_0 = arith.constant 0 : index
    %0 = vector.load %arg0[%c0, %c0_0] : memref<32x32xf32, #tpu.memory_space<vmem>>, vector<32x32xf32>
    %c0_1 = arith.constant 0 : index
    %c0_2 = arith.constant 0 : index
    %1 = vector.load %arg1[%c0_1, %c0_2] : memref<32x128xf32, #tpu.memory_space<vmem>>, vector<32x128xf32>
    %cst = arith.constant dense<0.000000e+00> : vector<32x128xf32>
    %2 = tpu.matmul %0, %1, %cst {dimension_numbers = #tpu.dot_dimension_numbers<[1], [0], [0], [1], [0, 0, 1, 1], [], []>} : vector<32x32xf32>, vector<32x128xf32>, vector<32x128xf32> -> vector<32x128xf32>
    %c0_3 = arith.constant 0 : index
    %c0_4 = arith.constant 0 : index
    %3 = vector.load %arg2[%c0_3, %c0_4] : memref<128x128xf32, #tpu.memory_space<vmem>>, vector<128x128xf32>
    %cst_5 = arith.constant dense<0.000000e+00> : vector<32x128xf32>
    %4 = tpu.matmul %2, %3, %cst_5 {dimension_numbers = #tpu.dot_dimension_numbers<[1], [0], [0], [1], [0, 0, 1, 1], [], []>} : vector<32x128xf32>, vector<128x128xf32>, vector<32x128xf32> -> vector<32x128xf32>
    %c0_6 = arith.constant 0 : index
    %c0_7 = arith.constant 0 : index
    %5 = vector.load %arg3[%c0_6, %c0_7] : memref<1x128xf32, #tpu.memory_space<vmem>>, vector<1x128xf32>
    %6 = vector.broadcast %5 : vector<1x128xf32> to vector<32x128xf32>
    %7 = arith.addf %4, %6 : vector<32x128xf32>
    %cst_8 = arith.constant 0.000000e+00 : f32
    %8 = vector.broadcast %cst_8 : f32 to vector<32x128xf32>
    %9 = arith.maximumf %7, %8 : vector<32x128xf32>
    %cst_9 = arith.constant dense<0.000000e+00> : vector<32x128xf32>
    %10 = tpu.matmul %0, %9, %cst_9 {dimension_numbers = #tpu.dot_dimension_numbers<[1], [0], [0], [1], [0, 0, 1, 1], [], []>} : vector<32x32xf32>, vector<32x128xf32>, vector<32x128xf32> -> vector<32x128xf32>
    %c0_10 = arith.constant 0 : index
    %c0_11 = arith.constant 0 : index
    %11 = vector.load %arg4[%c0_10, %c0_11] : memref<128x128xf32, #tpu.memory_space<vmem>>, vector<128x128xf32>
    %cst_12 = arith.constant dense<0.000000e+00> : vector<32x128xf32>
    %12 = tpu.matmul %10, %11, %cst_12 {dimension_numbers = #tpu.dot_dimension_numbers<[1], [0], [0], [1], [0, 0, 1, 1], [], []>} : vector<32x128xf32>, vector<128x128xf32>, vector<32x128xf32> -> vector<32x128xf32>
    %c0_13 = arith.constant 0 : index
    %c0_14 = arith.constant 0 : index
    %13 = vector.load %arg5[%c0_13, %c0_14] : memref<1x128xf32, #tpu.memory_space<vmem>>, vector<1x128xf32>
    %14 = vector.broadcast %13 : vector<1x128xf32> to vector<32x128xf32>
    %15 = arith.addf %12, %14 : vector<32x128xf32>
    %c0_15 = arith.constant 0 : index
    %c0_16 = arith.constant 0 : index
    %16 = vector.load %arg6[%c0_15, %c0_16] : memref<32x128xf32, #tpu.memory_space<vmem>>, vector<32x128xf32>
    tpu.vector_store %arg6[%c0_15, %c0_16], %15 {strides = array<i32>} : memref<32x128xf32, #tpu.memory_space<vmem>>, vector<32x128xf32>,
    return
  }
}

</mosaic_0001>

<llo_original>
// kernel: tpu_custom_call.1
$region0: #{tpu_custom_call.1}
  #allocation0 [shape = 'u32[]', space=smem, size = 0x4, offset = 0x4, fixed_abs, tag = 'smem constant byte address 0x4 - core index']
  #allocation1 [shape = 'u32[144,128]{1,0:T(1,128)}', space=vmem, size = 0x12000, scoped, tag = 'internal scratch']
  %s0 = inlined_call_operand.hbm [shape: f32[32,32], index: 0, kind: input, shape index: {}]
  %s1 = inlined_call_operand.hbm [shape: f32[32,128], index: 1, kind: input, shape index: {}]
  %s2 = inlined_call_operand.hbm [shape: f32[128,128], index: 2, kind: input, shape index: {}]
  %s3 = inlined_call_operand.vmem [shape: f32[1,128], index: 3, kind: input, shape index: {}]
  %s4 = inlined_call_operand.hbm [shape: f32[128,128], index: 4, kind: input, shape index: {}]
  %s5 = inlined_call_operand.vmem [shape: f32[1,128], index: 5, kind: input, shape index: {}]
  %s6 = inlined_call_operand.hbm [shape: f32[32,128], index: 6, kind: output, shape index: {}]
  %s7 = sld [smem:[#allocation0]]
  $region50: #{tpu_custom_call.1} parent=0
    _
  %s9 = ssub.s32 1, %s7
  %s10 = scalar_select 0, %s9, %s7
  $region1: #{tpu_custom_call.1} parent=0
    #allocation2 [shape = 'u8[16384]{0}', space=vmem, size = 0x4000, scoped, tag = 'input window, operand 0, single buffered']
    #allocation3 [shape = 's32[1]{0}', space=sflag, size = 0x4, scoped, tag = 'scoped memory for tpu_custom_call.1']
    #allocation4 [shape = 's32[1]{0}', space=sflag, size = 0x4, scoped, tag = 'scoped memory for tpu_custom_call.1']
    #allocation5 [shape = 'u8[16384]{0}', space=vmem, size = 0x4000, scoped, tag = 'input window, operand 1, single buffered']
    #allocation6 [shape = 's32[1]{0}', space=sflag, size = 0x4, scoped, tag = 'scoped memory for tpu_custom_call.1']
    #allocation7 [shape = 'u8[65536]{0}', space=vmem, size = 0x10000, scoped, tag = 'input window, operand 2, single buffered']
    #allocation8 [shape = 'u8[65536]{0}', space=vmem, size = 0x10000, scoped, tag = 'input window, operand 4, single buffered']
    #allocation9 [shape = 's32[1]{0}', space=sflag, size = 0x4, scoped, tag = 'scoped memory for tpu_custom_call.1']
    #allocation10 [shape = 'u8[16384]{0}', space=vmem, size = 0x4000, scoped, tag = 'output window, operand 0, single buffered']
    %11 = vsyncpa [#allocation3], 0
    %12 = vsyncpa [#allocation6], 0
    %13 = vsyncpa [#allocation9], 0
    %14 = vsyncpa [#allocation4], 0
    // Predicated region
    $region2: #{tpu_custom_call.1} parent=1 // pred_check
      _
    $region3: #{tpu_custom_call.1} parent=1 // pred_check_branch
      %16 = sbr.rel (0) target = $region5
    $region4: #{tpu_custom_call.1} parent=1 // pred_region
      %s18 = ssub.s32 512, 512
      %19 = vsyncadd [#allocation3], %s18
      %s20 = sshll.u32 [#allocation2], 4
      %s21 = int_to_ptr.vmem [resolvable:$true] %s20
      %26 = dma.hbm_to_vmem [thread:$0]  %s0, 512, %s21, [#allocation3], 128, 128, 8
    $region5: #{tpu_custom_call.1} parent=1 // pred_fallthru
      _
    // Predicated region
    $region6: #{tpu_custom_call.1} parent=1 // pred_check
      _
    $region7: #{tpu_custom_call.1} parent=1 // pred_check_branch
      %28 = sbr.rel (0) target = $region9
    $region8: #{tpu_custom_call.1} parent=1 // pred_region
      %s30 = ssub.s32 512, 512
      %31 = vsyncadd [#allocation6], %s30
      %s32 = sshll.u32 [#allocation5], 4
      %s33 = int_to_ptr.vmem [resolvable:$true] %s32
      %38 = dma.hbm_to_vmem [thread:$0]  %s1, 512, %s33, [#allocation6], 128, 128, 8
    $region9: #{tpu_custom_call.1} parent=1 // pred_fallthru
      _
    // Predicated region
    $region10: #{tpu_custom_call.1} parent=1 // pred_check
      _
    $region11: #{tpu_custom_call.1} parent=1 // pred_check_branch
      %40 = sbr.rel (0) target = $region13
    $region12: #{tpu_custom_call.1} parent=1 // pred_region
      %s42 = ssub.s32 2048, 2048
      %43 = vsyncadd [#allocation6], %s42
      %s44 = sshll.u32 [#allocation7], 4
      %s45 = int_to_ptr.vmem [resolvable:$true] %s44
      %50 = dma.hbm_to_vmem [thread:$0]  %s2, 2048, %s45, [#allocation6], 128, 128, 8
    $region13: #{tpu_custom_call.1} parent=1 // pred_fallthru
      _
    // Predicated region
    $region14: #{tpu_custom_call.1} parent=1 // pred_check
      _
    $region15: #{tpu_custom_call.1} parent=1 // pred_check_branch
      %52 = sbr.rel (0) target = $region17
    $region16: #{tpu_custom_call.1} parent=1 // pred_region
      _
    $region17: #{tpu_custom_call.1} parent=1 // pred_fallthru
      _
    // Predicated region
    $region18: #{tpu_custom_call.1} parent=1 // pred_check
      _
    $region19: #{tpu_custom_call.1} parent=1 // pred_check_branch
      %54 = sbr.rel (0) target = $region21
    $region20: #{tpu_custom_call.1} parent=1 // pred_region
      %s56 = ssub.s32 2048, 2048
      %57 = vsyncadd [#allocation9], %s56
      %s58 = sshll.u32 [#allocation8], 4
      %s59 = int_to_ptr.vmem [resolvable:$true] %s58
      %64 = dma.hbm_to_vmem [thread:$0]  %s4, 2048, %s59, [#allocation9], 128, 128, 8
    $region21: #{tpu_custom_call.1} parent=1 // pred_fallthru
      _
    // Predicated region
    $region22: #{tpu_custom_call.1} parent=1 // pred_check
      _
    $region23: #{tpu_custom_call.1} parent=1 // pred_check_branch
      %66 = sbr.rel (0) target = $region25
    $region24: #{tpu_custom_call.1} parent=1 // pred_region
      _
    $region25: #{tpu_custom_call.1} parent=1 // pred_fallthru
      _
    // Predicated region
    $region26: #{tpu_custom_call.1} parent=1 // pred_check
      _
    $region27: #{tpu_custom_call.1} parent=1 // pred_check_branch
      %68 = sbr.rel (0) target = $region29
    $region28: #{tpu_custom_call.1} parent=1 // pred_region
      %69 = dma.done [#allocation3], 512
    $region29: #{tpu_custom_call.1} parent=1 // pred_fallthru
      _
    // Predicated region
    $region30: #{tpu_custom_call.1} parent=1 // pred_check
      _
    $region31: #{tpu_custom_call.1} parent=1 // pred_check_branch
      %71 = sbr.rel (0) target = $region33
    $region32: #{tpu_custom_call.1} parent=1 // pred_region
      %72 = dma.done [#allocation6], 512
    $region33: #{tpu_custom_call.1} parent=1 // pred_fallthru
      _
    // Predicated region
    $region34: #{tpu_custom_call.1} parent=1 // pred_check
      _
    $region35: #{tpu_custom_call.1} parent=1 // pred_check_branch
      %74 = sbr.rel (0) target = $region37
    $region36: #{tpu_custom_call.1} parent=1 // pred_region
      %75 = dma.done [#allocation6], 2048
    $region37: #{tpu_custom_call.1} parent=1 // pred_fallthru
      _
    // Predicated region
    $region38: #{tpu_custom_call.1} parent=1 // pred_check
      _
    $region39: #{tpu_custom_call.1} parent=1 // pred_check_branch
      %77 = sbr.rel (0) target = $region41
    $region40: #{tpu_custom_call.1} parent=1 // pred_region
      %78 = dma.done [#allocation9], 2048
    $region41: #{tpu_custom_call.1} parent=1 // pred_fallthru
      _
    %v79 = vld [vmem:[#allocation2] sm:$0xff]
    %v80 = vld [vmem:[#allocation2 + $0x8] sm:$0xff]
    %v81 = vld [vmem:[#allocation2 + $0x10] sm:$0xff]
    %v82 = vld [vmem:[#allocation2 + $0x18] sm:$0xff]
    %v83 = vld [vmem:[#allocation5] sm:$0xff]
    %v84 = vld [vmem:[#allocation5 + $0x8] sm:$0xff]
    %v85 = vld [vmem:[#allocation5 + $0x10] sm:$0xff]
    %v86 = vld [vmem:[#allocation5 + $0x18] sm:$0xff]
    %vm87 = vcmask 261120
    %v89 = vsel %vm87, %v79, 0
    %v92 = vsel %vm87, %v80, 0
    %v95 = vsel %vm87, %v81, 0
    %v98 = vsel %vm87, %v82, 0
    %100 = vmatprep.subr.mxu0 0.0
    %101 = vmatpush1.msra.mxu0 %v83
    %102 = vmatprep.subr.mxu0 0.0
    %103 = vmatpush1.msra.mxu0 %v84
    %104 = vmatprep.subr.mxu0 0.0
    %105 = vmatpush1.msra.mxu0 %v85
    %106 = vmatprep.subr.mxu0 0.0
    %107 = vmatpush1.msra.mxu0 %v86
    %108 = vmatprep.subr.mxu0 0.0
    %109 = vmatpush1.msra.mxu0 0.0
    %110 = vmatprep.subr.mxu0 0.0
    %111 = vmatpush1.msra.mxu0 0.0
    %112 = vmatprep.subr.mxu0 0.0
    %113 = vmatpush1.msra.mxu0 0.0
    %114 = vmatprep.subr.mxu0 0.0
    %115 = vmatpush1.msra.mxu0 0.0
    %116 = vmatprep.subr.mxu0 0.0
    %117 = vmatpush1.msra.mxu0 0.0
    %118 = vmatprep.subr.mxu0 0.0
    %119 = vmatpush1.msra.mxu0 0.0
    %120 = vmatprep.subr.mxu0 0.0
    %121 = vmatpush1.msra.mxu0 0.0
    %122 = vmatprep.subr.mxu0 0.0
    %123 = vmatpush1.msra.mxu0 0.0
    %124 = vmatprep.subr.mxu0 0.0
    %125 = vmatpush1.msra.mxu0 0.0
    %126 = vmatprep.subr.mxu0 0.0
    %127 = vmatpush1.msra.mxu0 0.0
    %128 = vmatprep.subr.mxu0 0.0
    %129 = vmatpush1.msra.mxu0 0.0
    %130 = vmatprep.subr.mxu0 0.0
    %131 = vmatpush1.msra.mxu0 0.0
    %132 = vmatprep.subr.mxu0 0.0
    %133 = vmatpush1.msra.mxu0 0.0
    %134 = vmatprep.subr.mxu0 0.0
    %135 = vmatpush1.msra.mxu0 0.0
    %136 = vmatprep.subr.mxu0 0.0
    %137 = vmatpush1.msra.mxu0 0.0
    %138 = vmatprep.subr.mxu0 0.0
    %139 = vmatpush1.msra.mxu0 0.0
    %140 = vmatprep.subr.mxu0 0.0
    %141 = vmatpush1.msra.mxu0 0.0
    %142 = vmatprep.subr.mxu0 0.0
    %143 = vmatpush1.msra.mxu0 0.0
    %144 = vmatprep.subr.mxu0 0.0
    %145 = vmatpush1.msra.mxu0 0.0
    %146 = vmatprep.subr.mxu0 0.0
    %147 = vmatpush1.msra.mxu0 0.0
    %148 = vmatprep.subr.mxu0 0.0
    %149 = vmatpush1.msra.mxu0 0.0
    %150 = vmatprep.subr.mxu0 0.0
    %151 = vmatpush1.msra.mxu0 0.0
    %152 = vmatprep.subr.mxu0 0.0
    %153 = vmatpush1.msra.mxu0 0.0
    %154 = vmatprep.subr.mxu0 0.0
    %155 = vmatpush1.msra.mxu0 0.0
    %156 = vmatprep.subr.mxu0 0.0
    %157 = vmatpush1.msra.mxu0 0.0
    %158 = vmatprep.subr.mxu0 0.0
    %159 = vmatpush1.msra.mxu0 0.0
    %160 = vmatprep.subr.mxu0 0.0
    %161 = vmatpush1.msra.mxu0 0.0
    %162 = vmatprep.subr.mxu0 0.0
    %163 = vmatpush1.msra.mxu0 0.0
    %164 = vmatprep.mubr.f32.mxu0 0.0
    %165 = vmatmul.mubr.f32.gmra.mrb[0].mxu0 %v89
    %v166 = vpop.f32.mrb[0].mxu0
    %v167 = vadd.f32 0.0, %v166
    %v168 = vpop.f32.mrb[0].mxu0
    %169 = vmatprep.mubr.f32.mxu0 0.0
    %170 = vmatmul.mubr.f32.gmra.mrb[0].mxu0 %v92
    %v171 = vpop.f32.mrb[0].mxu0
    %v172 = vadd.f32 0.0, %v171
    %v173 = vpop.f32.mrb[0].mxu0
    %174 = vmatprep.mubr.f32.mxu0 0.0
    %175 = vmatmul.mubr.f32.gmra.mrb[0].mxu0 %v95
    %v176 = vpop.f32.mrb[0].mxu0
    %v177 = vadd.f32 0.0, %v176
    %v178 = vpop.f32.mrb[0].mxu0
    %179 = vmatprep.mubr.f32.mxu0 0.0
    %180 = vmatmul.mubr.f32.gmra.mrb[0].mxu0 %v98
    %v181 = vpop.f32.mrb[0].mxu0
    %v182 = vadd.f32 0.0, %v181
    %v183 = vpop.f32.mrb[0].mxu0
    %184 = vdwg.mxu0
    %v185 = vld [vmem:[#allocation7] sm:$0xff]
    %v186 = vld [vmem:[#allocation7 + $0x8] sm:$0xff]
    %v187 = vld [vmem:[#allocation7 + $0x10] sm:$0xff]
    %v188 = vld [vmem:[#allocation7 + $0x18] sm:$0xff]
    %v189 = vld [vmem:[#allocation7 + $0x20] sm:$0xff]
    %v190 = vld [vmem:[#allocation7 + $0x28] sm:$0xff]
    %v191 = vld [vmem:[#allocation7 + $0x30] sm:$0xff]
    %v192 = vld [vmem:[#allocation7 + $0x38] sm:$0xff]
    %v193 = vld [vmem:[#allocation7 + $0x40] sm:$0xff]
    %v194 = vld [vmem:[#allocation7 + $0x48] sm:$0xff]
    %v195 = vld [vmem:[#allocation7 + $0x50] sm:$0xff]
    %v196 = vld [vmem:[#allocation7 + $0x58] sm:$0xff]
    %v197 = vld [vmem:[#allocation7 + $0x60] sm:$0xff]
    %v198 = vld [vmem:[#allocation7 + $0x68] sm:$0xff]
    %v199 = vld [vmem:[#allocation7 + $0x70] sm:$0xff]
    %v200 = vld [vmem:[#allocation7 + $0x78] sm:$0xff]
    %v201 = vld [vmem:[%s3] sm:$0x1]
    %v203 = vlaneseq
    %v204 = vshrl.u32 %v203, 7
    %v205 = vsub.s32 0, %v204
    %v206 = vrot.slane %v201, %v205
    %208 = vmatprep.subr.mxu0 0.0
    %209 = vmatpush1.msra.mxu0 %v185
    %210 = vmatprep.subr.mxu0 0.0
    %211 = vmatpush1.msra.mxu0 %v186
    %212 = vmatprep.subr.mxu0 0.0
    %213 = vmatpush1.msra.mxu0 %v187
    %214 = vmatprep.subr.mxu0 0.0
    %215 = vmatpush1.msra.mxu0 %v188
    %216 = vmatprep.subr.mxu0 0.0
    %217 = vmatpush1.msra.mxu0 %v189
    %218 = vmatprep.subr.mxu0 0.0
    %219 = vmatpush1.msra.mxu0 %v190
    %220 = vmatprep.subr.mxu0 0.0
    %221 = vmatpush1.msra.mxu0 %v191
    %222 = vmatprep.subr.mxu0 0.0
    %223 = vmatpush1.msra.mxu0 %v192
    %224 = vmatprep.subr.mxu0 0.0
    %225 = vmatpush1.msra.mxu0 %v193
    %226 = vmatprep.subr.mxu0 0.0
    %227 = vmatpush1.msra.mxu0 %v194
    %228 = vmatprep.subr.mxu0 0.0
    %229 = vmatpush1.msra.mxu0 %v195
    %230 = vmatprep.subr.mxu0 0.0
    %231 = vmatpush1.msra.mxu0 %v196
    %232 = vmatprep.subr.mxu0 0.0
    %233 = vmatpush1.msra.mxu0 %v197
    %234 = vmatprep.subr.mxu0 0.0
    %235 = vmatpush1.msra.mxu0 %v198
    %236 = vmatprep.subr.mxu0 0.0
    %237 = vmatpush1.msra.mxu0 %v199
    %238 = vmatprep.subr.mxu0 0.0
    %239 = vmatpush1.msra.mxu0 %v200
    %240 = vmatprep.subr.mxu0 0.0
    %241 = vmatpush1.msra.mxu0 0.0
    %242 = vmatprep.subr.mxu0 0.0
    %243 = vmatpush1.msra.mxu0 0.0
    %244 = vmatprep.subr.mxu0 0.0
    %245 = vmatpush1.msra.mxu0 0.0
    %246 = vmatprep.subr.mxu0 0.0
    %247 = vmatpush1.msra.mxu0 0.0
    %248 = vmatprep.subr.mxu0 0.0
    %249 = vmatpush1.msra.mxu0 0.0
    %250 = vmatprep.subr.mxu0 0.0
    %251 = vmatpush1.msra.mxu0 0.0
    %252 = vmatprep.subr.mxu0 0.0
    %253 = vmatpush1.msra.mxu0 0.0
    %254 = vmatprep.subr.mxu0 0.0
    %255 = vmatpush1.msra.mxu0 0.0
    %256 = vmatprep.subr.mxu0 0.0
    %257 = vmatpush1.msra.mxu0 0.0
    %258 = vmatprep.subr.mxu0 0.0
    %259 = vmatpush1.msra.mxu0 0.0
    %260 = vmatprep.subr.mxu0 0.0
    %261 = vmatpush1.msra.mxu0 0.0
    %262 = vmatprep.subr.mxu0 0.0
    %263 = vmatpush1.msra.mxu0 0.0
    %264 = vmatprep.subr.mxu0 0.0
    %265 = vmatpush1.msra.mxu0 0.0
    %266 = vmatprep.subr.mxu0 0.0
    %267 = vmatpush1.msra.mxu0 0.0
    %268 = vmatprep.subr.mxu0 0.0
    %269 = vmatpush1.msra.mxu0 0.0
    %270 = vmatprep.subr.mxu0 0.0
    %271 = vmatpush1.msra.mxu0 0.0
    %272 = vmatprep.mubr.f32.mxu0 0.0
    %273 = vmatmul.mubr.f32.gmra.mrb[0].mxu0 %v167
    %v274 = vpop.f32.mrb[0].mxu0
    %v275 = vadd.f32 %v206, %v274
    %v276 = vpop.f32.mrb[0].mxu0
    %277 = vmatprep.mubr.f32.mxu0 0.0
    %278 = vmatmul.mubr.f32.gmra.mrb[0].mxu0 %v172
    %v279 = vpop.f32.mrb[0].mxu0
    %v280 = vadd.f32 %v206, %v279
    %v281 = vpop.f32.mrb[0].mxu0
    %282 = vmatprep.mubr.f32.mxu0 0.0
    %283 = vmatmul.mubr.f32.gmra.mrb[0].mxu0 %v177
    %v284 = vpop.f32.mrb[0].mxu0
    %v285 = vadd.f32 %v206, %v284
    %v286 = vpop.f32.mrb[0].mxu0
    %287 = vmatprep.mubr.f32.mxu0 0.0
    %288 = vmatmul.mubr.f32.gmra.mrb[0].mxu0 %v182
    %v289 = vpop.f32.mrb[0].mxu0
    %v290 = vadd.f32 %v206, %v289
    %v291 = vpop.f32.mrb[0].mxu0
    %292 = vdwg.mxu0
    %v293 = vmax.f32 %v275, 0.0
    %v294 = vmax.f32 %v280, 0.0
    %v295 = vmax.f32 %v285, 0.0
    %v296 = vmax.f32 %v290, 0.0
    %297 = vmatprep.subr.mxu0 0.0
    %298 = vmatpush1.msra.mxu0 %v293
    %299 = vmatprep.subr.mxu0 0.0
    %300 = vmatpush1.msra.mxu0 %v294
    %301 = vmatprep.subr.mxu0 0.0
    %302 = vmatpush1.msra.mxu0 %v295
    %303 = vmatprep.subr.mxu0 0.0
    %304 = vmatpush1.msra.mxu0 %v296
    %305 = vmatprep.subr.mxu0 0.0
    %306 = vmatpush1.msra.mxu0 0.0
    %307 = vmatprep.subr.mxu0 0.0
    %308 = vmatpush1.msra.mxu0 0.0
    %309 = vmatprep.subr.mxu0 0.0
    %310 = vmatpush1.msra.mxu0 0.0
    %311 = vmatprep.subr.mxu0 0.0
    %312 = vmatpush1.msra.mxu0 0.0
    %313 = vmatprep.subr.mxu0 0.0
    %314 = vmatpush1.msra.mxu0 0.0
    %315 = vmatprep.subr.mxu0 0.0
    %316 = vmatpush1.msra.mxu0 0.0
    %317 = vmatprep.subr.mxu0 0.0
    %318 = vmatpush1.msra.mxu0 0.0
    %319 = vmatprep.subr.mxu0 0.0
    %320 = vmatpush1.msra.mxu0 0.0
    %321 = vmatprep.subr.mxu0 0.0
    %322 = vmatpush1.msra.mxu0 0.0
    %323 = vmatprep.subr.mxu0 0.0
    %324 = vmatpush1.msra.mxu0 0.0
    %325 = vmatprep.subr.mxu0 0.0
    %326 = vmatpush1.msra.mxu0 0.0
    %327 = vmatprep.subr.mxu0 0.0
    %328 = vmatpush1.msra.mxu0 0.0
    %329 = vmatprep.subr.mxu0 0.0
    %330 = vmatpush1.msra.mxu0 0.0
    %331 = vmatprep.subr.mxu0 0.0
    %332 = vmatpush1.msra.mxu0 0.0
    %333 = vmatprep.subr.mxu0 0.0
    %334 = vmatpush1.msra.mxu0 0.0
    %335 = vmatprep.subr.mxu0 0.0
    %336 = vmatpush1.msra.mxu0 0.0
    %337 = vmatprep.subr.mxu0 0.0
    %338 = vmatpush1.msra.mxu0 0.0
    %339 = vmatprep.subr.mxu0 0.0
    %340 = vmatpush1.msra.mxu0 0.0
    %341 = vmatprep.subr.mxu0 0.0
    %342 = vmatpush1.msra.mxu0 0.0
    %343 = vmatprep.subr.mxu0 0.0
    %344 = vmatpush1.msra.mxu0 0.0
    %345 = vmatprep.subr.mxu0 0.0
    %346 = vmatpush1.msra.mxu0 0.0
    %347 = vmatprep.subr.mxu0 0.0
    %348 = vmatpush1.msra.mxu0 0.0
    %349 = vmatprep.subr.mxu0 0.0
    %350 = vmatpush1.msra.mxu0 0.0
    %351 = vmatprep.subr.mxu0 0.0
    %352 = vmatpush1.msra.mxu0 0.0
    %353 = vmatprep.subr.mxu0 0.0
    %354 = vmatpush1.msra.mxu0 0.0
    %355 = vmatprep.subr.mxu0 0.0
    %356 = vmatpush1.msra.mxu0 0.0
    %357 = vmatprep.subr.mxu0 0.0
    %358 = vmatpush1.msra.mxu0 0.0
    %359 = vmatprep.subr.mxu0 0.0
    %360 = vmatpush1.msra.mxu0 0.0
    %361 = vmatprep.mubr.f32.mxu0 0.0
    %362 = vmatmul.mubr.f32.gmra.mrb[0].mxu0 %v89
    %v363 = vpop.f32.mrb[0].mxu0
    %v364 = vadd.f32 0.0, %v363
    %v365 = vpop.f32.mrb[0].mxu0
    %366 = vmatprep.mubr.f32.mxu0 0.0
    %367 = vmatmul.mubr.f32.gmra.mrb[0].mxu0 %v92
    %v368 = vpop.f32.mrb[0].mxu0
    %v369 = vadd.f32 0.0, %v368
    %v370 = vpop.f32.mrb[0].mxu0
    %371 = vmatprep.mubr.f32.mxu0 0.0
    %372 = vmatmul.mubr.f32.gmra.mrb[0].mxu0 %v95
    %v373 = vpop.f32.mrb[0].mxu0
    %v374 = vadd.f32 0.0, %v373
    %v375 = vpop.f32.mrb[0].mxu0
    %376 = vmatprep.mubr.f32.mxu0 0.0
    %377 = vmatmul.mubr.f32.gmra.mrb[0].mxu0 %v98
    %v378 = vpop.f32.mrb[0].mxu0
    %v379 = vadd.f32 0.0, %v378
    %v380 = vpop.f32.mrb[0].mxu0
    %381 = vdwg.mxu0
    %v382 = vld [vmem:[#allocation8] sm:$0xff]
    %v383 = vld [vmem:[#allocation8 + $0x8] sm:$0xff]
    %v384 = vld [vmem:[#allocation8 + $0x10] sm:$0xff]
    %v385 = vld [vmem:[#allocation8 + $0x18] sm:$0xff]
    %v386 = vld [vmem:[#allocation8 + $0x20] sm:$0xff]
    %v387 = vld [vmem:[#allocation8 + $0x28] sm:$0xff]
    %v388 = vld [vmem:[#allocation8 + $0x30] sm:$0xff]
    %v389 = vld [vmem:[#allocation8 + $0x38] sm:$0xff]
    %v390 = vld [vmem:[#allocation8 + $0x40] sm:$0xff]
    %v391 = vld [vmem:[#allocation8 + $0x48] sm:$0xff]
    %v392 = vld [vmem:[#allocation8 + $0x50] sm:$0xff]
    %v393 = vld [vmem:[#allocation8 + $0x58] sm:$0xff]
    %v394 = vld [vmem:[#allocation8 + $0x60] sm:$0xff]
    %v395 = vld [vmem:[#allocation8 + $0x68] sm:$0xff]
    %v396 = vld [vmem:[#allocation8 + $0x70] sm:$0xff]
    %v397 = vld [vmem:[#allocation8 + $0x78] sm:$0xff]
    %v398 = vld [vmem:[%s5] sm:$0x1]
    %v400 = vlaneseq
    %v401 = vshrl.u32 %v400, 7
    %v402 = vsub.s32 0, %v401
    %v403 = vrot.slane %v398, %v402
    %405 = vmatprep.subr.mxu0 0.0
    %406 = vmatpush1.msra.mxu0 %v382
    %407 = vmatprep.subr.mxu0 0.0
    %408 = vmatpush1.msra.mxu0 %v383
    %409 = vmatprep.subr.mxu0 0.0
    %410 = vmatpush1.msra.mxu0 %v384
    %411 = vmatprep.subr.mxu0 0.0
    %412 = vmatpush1.msra.mxu0 %v385
    %413 = vmatprep.subr.mxu0 0.0
    %414 = vmatpush1.msra.mxu0 %v386
    %415 = vmatprep.subr.mxu0 0.0
    %416 = vmatpush1.msra.mxu0 %v387
    %417 = vmatprep.subr.mxu0 0.0
    %418 = vmatpush1.msra.mxu0 %v388
    %419 = vmatprep.subr.mxu0 0.0
    %420 = vmatpush1.msra.mxu0 %v389
    %421 = vmatprep.subr.mxu0 0.0
    %422 = vmatpush1.msra.mxu0 %v390
    %423 = vmatprep.subr.mxu0 0.0
    %424 = vmatpush1.msra.mxu0 %v391
    %425 = vmatprep.subr.mxu0 0.0
    %426 = vmatpush1.msra.mxu0 %v392
    %427 = vmatprep.subr.mxu0 0.0
    %428 = vmatpush1.msra.mxu0 %v393
    %429 = vmatprep.subr.mxu0 0.0
    %430 = vmatpush1.msra.mxu0 %v394
    %431 = vmatprep.subr.mxu0 0.0
    %432 = vmatpush1.msra.mxu0 %v395
    %433 = vmatprep.subr.mxu0 0.0
    %434 = vmatpush1.msra.mxu0 %v396
    %435 = vmatprep.subr.mxu0 0.0
    %436 = vmatpush1.msra.mxu0 %v397
    %437 = vmatprep.subr.mxu0 0.0
    %438 = vmatpush1.msra.mxu0 0.0
    %439 = vmatprep.subr.mxu0 0.0
    %440 = vmatpush1.msra.mxu0 0.0
    %441 = vmatprep.subr.mxu0 0.0
    %442 = vmatpush1.msra.mxu0 0.0
    %443 = vmatprep.subr.mxu0 0.0
    %444 = vmatpush1.msra.mxu0 0.0
    %445 = vmatprep.subr.mxu0 0.0
    %446 = vmatpush1.msra.mxu0 0.0
    %447 = vmatprep.subr.mxu0 0.0
    %448 = vmatpush1.msra.mxu0 0.0
    %449 = vmatprep.subr.mxu0 0.0
    %450 = vmatpush1.msra.mxu0 0.0
    %451 = vmatprep.subr.mxu0 0.0
    %452 = vmatpush1.msra.mxu0 0.0
    %453 = vmatprep.subr.mxu0 0.0
    %454 = vmatpush1.msra.mxu0 0.0
    %455 = vmatprep.subr.mxu0 0.0
    %456 = vmatpush1.msra.mxu0 0.0
    %457 = vmatprep.subr.mxu0 0.0
    %458 = vmatpush1.msra.mxu0 0.0
    %459 = vmatprep.subr.mxu0 0.0
    %460 = vmatpush1.msra.mxu0 0.0
    %461 = vmatprep.subr.mxu0 0.0
    %462 = vmatpush1.msra.mxu0 0.0
    %463 = vmatprep.subr.mxu0 0.0
    %464 = vmatpush1.msra.mxu0 0.0
    %465 = vmatprep.subr.mxu0 0.0
    %466 = vmatpush1.msra.mxu0 0.0
    %467 = vmatprep.subr.mxu0 0.0
    %468 = vmatpush1.msra.mxu0 0.0
    %469 = vmatprep.mubr.f32.mxu0 0.0
    %470 = vmatmul.mubr.f32.gmra.mrb[0].mxu0 %v364
    %v471 = vpop.f32.mrb[0].mxu0
    %v472 = vadd.f32 %v403, %v471
    %v473 = vpop.f32.mrb[0].mxu0
    %474 = vmatprep.mubr.f32.mxu0 0.0
    %475 = vmatmul.mubr.f32.gmra.mrb[0].mxu0 %v369
    %v476 = vpop.f32.mrb[0].mxu0
    %v477 = vadd.f32 %v403, %v476
    %v478 = vpop.f32.mrb[0].mxu0
    %479 = vmatprep.mubr.f32.mxu0 0.0
    %480 = vmatmul.mubr.f32.gmra.mrb[0].mxu0 %v374
    %v481 = vpop.f32.mrb[0].mxu0
    %v482 = vadd.f32 %v403, %v481
    %v483 = vpop.f32.mrb[0].mxu0
    %484 = vmatprep.mubr.f32.mxu0 0.0
    %485 = vmatmul.mubr.f32.gmra.mrb[0].mxu0 %v379
    %v486 = vpop.f32.mrb[0].mxu0
    %v487 = vadd.f32 %v403, %v486
    %v488 = vpop.f32.mrb[0].mxu0
    %489 = vdwg.mxu0
    %490 = vst [vmem:[#allocation10] sm:$0xff] %v472
    %491 = vst [vmem:[#allocation10 + $0x8] sm:$0xff] %v477
    %492 = vst [vmem:[#allocation10 + $0x10] sm:$0xff] %v482
    %493 = vst [vmem:[#allocation10 + $0x18] sm:$0xff] %v487
    // Predicated region
    $region42: #{tpu_custom_call.1} parent=1 // pred_check
      _
    $region43: #{tpu_custom_call.1} parent=1 // pred_check_branch
      %495 = sbr.rel (0) target = $region45
    $region44: #{tpu_custom_call.1} parent=1 // pred_region
      %s497 = ssub.s32 512, 512
      %498 = vsyncadd [#allocation4], %s497
      %s499 = sshll.u32 [#allocation10], 4
      %s500 = int_to_ptr.vmem [resolvable:$true] %s499
      %505 = dma.vmem_to_hbm [thread:$0]  %s500, 512, %s6, [#allocation4], 128, 128, 8
    $region45: #{tpu_custom_call.1} parent=1 // pred_fallthru
      _
    // Predicated region
    $region46: #{tpu_custom_call.1} parent=1 // pred_check
      _
    $region47: #{tpu_custom_call.1} parent=1 // pred_check_branch
      %507 = sbr.rel (0) target = $region49
    $region48: #{tpu_custom_call.1} parent=1 // pred_region
      %508 = dma.done [#allocation4], 512
    $region49: #{tpu_custom_call.1} parent=1 // pred_fallthru
      _
    %509 = vsyncpa [#allocation3], 1
    %510 = vsyncpa [#allocation6], 1
    %511 = vsyncpa [#allocation9], 1
    %512 = vsyncpa [#allocation4], 1

</llo_original>
